<compile_context>
chip_gen: v7x
topology: tpu7x:2x2x1
jax: 0.10.0
libtpu: 0.0.40
codegen_flags: <defaults>
</compile_context>

<pallas_src>
import functools

import jax
import jax.numpy as jnp
from jax.experimental import pallas as pl
from jax.experimental.pallas import tpu as pltpu

_HIGH = jax.lax.Precision.HIGHEST


def _round_up(n, m):
    return (n + m - 1) // m * m


def _pick_batch_tile(batch):
    """Per-generation batch tile (rows per grid step), rounded to 16 rows."""
    kind = ""
    try:
        kind = jax.devices()[0].device_kind.lower()
    except Exception:
        pass
    rounded = max(16, _round_up(batch, 16))        # bf16 packs 2 rows / sublane
    if "v7" in kind:
        # Ensure >= 2 grid steps so dimension_semantics=("parallel",) spreads
        # work over both TensorCores of a v7x chip.
        return min(min(256, max(16, _round_up(pl.cdiv(batch, 2), 16))), rounded)
    if "v6" in kind and batch >= 256:
        return min(256, rounded)                   # fill the 2x256 MXU M dim
    return min(128, rounded)                       # v5e / default


# -----------------------------------------------------------------------------
# Kernel
# -----------------------------------------------------------------------------
def _fusion_kernel(*refs, use_text):
    """Folded FusionModel forward for one batch tile.

    pooled_ref : (TB, C)   f32   GAP'd backbone features (GAP hoisted to host)
    ci_ref     : (TB, 512) bf16  clip_image (pre-cast on host)
    [ct_ref    : (TB, 512) bf16  clip_text]
    wci/bci    : fc_clip_image weight (bf16) / bias (f32, (1,512))
    [wct/bct]  : fc_clip_text weight/bias (only when nonzero)
    ai/[at]/cq : folded projection rows (1,512)/(1,512)/(1,C)
    sc_ref     : SMEM f32[2] = [PReLU slope, folded tail bias]
    out_ref    : (1, TB) f32 — lane-dense sigmoid row
    """
    if use_text:
        (pooled_ref, ci_ref, ct_ref, wci_ref, bci_ref, wct_ref, bct_ref,
         ai_ref, at_ref, cq_ref, sc_ref, out_ref) = refs
    else:
        (pooled_ref, ci_ref, wci_ref, bci_ref,
         ai_ref, cq_ref, sc_ref, out_ref) = refs

    alpha = sc_ref[0]          # PReLU slope (SMEM scalar)
    d = sc_ref[1]              # folded affine-tail bias (SMEM scalar)

    def prelu(v):
        return jnp.where(v > 0, v, alpha * v)

    # ---- quality branch: its Linear is folded into cq (GAP done host-side) --
    acc = jnp.sum(pooled_ref[...] * cq_ref[...], axis=-1, keepdims=True)  # (TB,1)

    # ---- clip image branch: the only remaining real matmul (bf16 MXU) -------
    img = jnp.dot(ci_ref[...], wci_ref[...],
                  preferred_element_type=jnp.float32) + bci_ref[...]
    img = prelu(img)                     # Dropout(p=0.5) == identity at inference
    acc = acc + jnp.sum(img * ai_ref[...], axis=-1, keepdims=True)

    if use_text:
        txt = jnp.dot(ct_ref[...], wct_ref[...],
                      preferred_element_type=jnp.float32) + bct_ref[...]
        txt = prelu(txt)
        acc = acc + jnp.sum(txt * at_ref[...], axis=-1, keepdims=True)

    z = acc + d                                        # (TB, 1)
    sig = 1.0 / (1.0 + jnp.exp(-z))                    # sigmoid
    out_ref[...] = sig.reshape(1, -1)                  # lane-dense (1, TB) store


# -----------------------------------------------------------------------------
# Parameters: raw (module-like) init + offline folding
# -----------------------------------------------------------------------------
def init_raw_params(key, in_channels):
    """nn.Linear-default init (uniform +-1/sqrt(fan_in)); fc_clip_text zeroed as in the module."""
    def lin(k, fan_in, fan_out, zero=False):
        if zero:
            return (jnp.zeros((fan_in, fan_out), jnp.float32),
                    jnp.zeros((1, fan_out), jnp.float32))
        bound = 1.0 / (fan_in ** 0.5)
        kw, kb = jax.random.split(k)
        w = jax.random.uniform(kw, (fan_in, fan_out), jnp.float32, -bound, bound)
        b = jax.random.uniform(kb, (1, fan_out), jnp.float32, -bound, bound)
        return w, b

    ks = jax.random.split(key, 7)
    wq, bq = lin(ks[0], in_channels, 512)        # quality-feature stub (GAP -> 512)
    wci, bci = lin(ks[1], 512, 512)              # fc_clip_image
    wct, bct = lin(ks[2], 512, 512, zero=True)   # fc_clip_text (zero weight + bias)
    alpha = jnp.float32(0.25)                    # nn.PReLU() default slope
    wf, bf = lin(ks[3], 1024, 1024)              # fc_final
    w1, b1 = lin(ks[4], 1536, 1536)              # fc1
    w2, b2 = lin(ks[5], 1536, 512)               # fc2
    w3, b3 = lin(ks[6], 512, 1)                  # fc3
    return dict(wq=wq, bq=bq, wci=wci, bci=bci, wct=wct, bct=bct, alpha=alpha,
                wf=wf, bf=bf, w1=w1, b1=b1, w2=w2, b2=b2, w3=w3, b3=b3)


def fold_params(raw):
    """Pre-multiply the activation-free tail (fc_final/fc1/fc2/fc3 and the
    quality stub's Linear) into small vectors; cast the surviving big matmul
    weights to bf16.  Exact algebra — no change in forward semantics."""
    mm = functools.partial(jnp.dot, precision=_HIGH)

    w2w3 = mm(raw["w2"], raw["w3"])              # (1536, 1)
    a_col = mm(raw["w1"][:512], w2w3)            # (512, 1)  fc1 rows fed by quality_features
    m_col = mm(raw["w1"][512:], w2w3)            # (1024,1)  fc1 rows fed by fc_final

    cq_col = mm(raw["wq"], a_col)                # (C, 1)    pooled -> logit
    ai_col = mm(raw["wf"][:512], m_col)          # (512, 1)  image_out -> logit
    at_col = mm(raw["wf"][512:], m_col)          # (512, 1)  text_out  -> logit

    d = (mm(raw["bq"], a_col) + mm(raw["bf"], m_col)
         + mm(raw["b1"], w2w3) + mm(raw["b2"], raw["w3"]) + raw["b3"])   # (1, 1)

    # Drop the text branch only when fc_clip_text is exactly zero (as in __init__).
    use_text = bool(jnp.any(raw["wct"] != 0)) or bool(jnp.any(raw["bct"] != 0))

    folded = dict(
        wci=raw["wci"].astype(jnp.bfloat16),
        bci=raw["bci"],
        ai=ai_col.reshape(1, 512),
        cq=cq_col.reshape(1, -1),
        scalars=jnp.array([raw["alpha"], d[0, 0]], jnp.float32),
        use_text=use_text,
    )
    if use_text:
        folded.update(
            wct=raw["wct"].astype(jnp.bfloat16),
            bct=raw["bct"],
            at=at_col.reshape(1, 512),
        )
    return folded


# -----------------------------------------------------------------------------
# Host wrapper
# -----------------------------------------------------------------------------
def fusion_forward(x, clip_image, clip_text, fp):
    """x: (B, C, H, W); clip_image / clip_text: (B, 512).  Returns (B, 1) scores."""
    B, C = x.shape[0], x.shape[1]
    use_text = fp["use_text"]

    # TODO(synk): the real MetaIQA/resnet18 backbone (checkpoint-loaded in
    # PyTorch) is not replicated; GAP + a folded Linear stands in for
    # quality_features (the unused `quality` output is skipped).
    # GAP hoisted out of the kernel: XLA fuses it with x's producer and the
    # kernel's per-tile DMA shrinks by H*W.
    pooled = jnp.mean(x.reshape(B, C, -1).astype(jnp.float32), axis=-1)   # (B, C)

    # Pre-cast clip features to bf16 (MXU consumes bf16 anyway): halves DMA.
    ci = clip_image.astype(jnp.bfloat16)
    ct = clip_text.astype(jnp.bfloat16) if use_text else None

    TB = _pick_batch_tile(B)
    if B < TB:
        # Tiny batches: pad once up to a single tile (negligible copy).
        pad = TB - B
        pooled = jnp.concatenate([pooled, jnp.zeros((pad, C), pooled.dtype)], axis=0)
        ci = jnp.concatenate([ci, jnp.zeros((pad, 512), ci.dtype)], axis=0)
        if use_text:
            ct = jnp.concatenate([ct, jnp.zeros((pad, 512), ct.dtype)], axis=0)
    # For B >= TB: no host-side pad copies — Pallas handles the last partial
    # block; padded rows are discarded by the final [:B] slice.
    nb = pl.cdiv(pooled.shape[0], TB)

    args = [pooled, ci]
    in_specs = [
        pl.BlockSpec((TB, C), lambda i: (i, 0)),
        pl.BlockSpec((TB, 512), lambda i: (i, 0)),
    ]
    if use_text:
        args.append(ct)
        in_specs.append(pl.BlockSpec((TB, 512), lambda i: (i, 0)))

    # Weights / folded vectors: full-array blocks with a constant index_map so
    # they are DMA'd once and stay VMEM-resident across batch grid steps
    # (~0.6 MiB total — far below the VMEM budget).
    const2 = lambda i: (0, 0)
    weights = [fp["wci"], fp["bci"]]
    if use_text:
        weights += [fp["wct"], fp["bct"]]
    weights += [fp["ai"]]
    if use_text:
        weights += [fp["at"]]
    weights += [fp["cq"]]
    for w in weights:
        args.append(w)
        in_specs.append(pl.BlockSpec(w.shape, const2))

    # PReLU slope + folded scalar bias -> SMEM (scalar path).
    args.append(fp["scalars"])
    in_specs.append(pl.BlockSpec(memory_space=pltpu.MemorySpace.SMEM))

    n_branch = 2 if use_text else 1
    rows = nb * TB
    flops = 2 * rows * 512 * 512 * n_branch + 2 * rows * (C + n_branch * 2 * 512)
    bytes_accessed = sum(int(a.size) * a.dtype.itemsize for a in args) + rows * 4
    cost = pl.CostEstimate(flops=int(flops), transcendentals=int(rows),
                           bytes_accessed=int(bytes_accessed))

    out = pl.pallas_call(
        functools.partial(_fusion_kernel, use_text=use_text),
        out_shape=jax.ShapeDtypeStruct((nb, TB), jnp.float32),   # lane-dense rows
        grid=(nb,),
        in_specs=in_specs,
        out_specs=pl.BlockSpec((1, TB), lambda i: (i, 0)),
        compiler_params=pltpu.CompilerParams(
            dimension_semantics=("parallel",),          # dual-TC on v7x, harmless elsewhere
            vmem_limit_bytes=32 * 1024 * 1024,          # conservative: fits v7x's 64 MiB VMEM
        ),
        cost_estimate=cost,
    )(*args)
    return out.reshape(rows, 1)[:B]


# -----------------------------------------------------------------------------
# Pure-JAX reference of the ORIGINAL (unfolded) forward, for verification.
# -----------------------------------------------------------------------------
def fusion_reference(x, clip_image, clip_text, raw, *, match_kernel_bf16=False):
    mm = functools.partial(jnp.dot, precision=_HIGH)
    B, C, H, W = x.shape
    pooled = jnp.mean(x.reshape(B, C, H * W), axis=-1)
    qf = mm(pooled, raw["wq"]) + raw["bq"]                     # quality stub

    alpha = raw["alpha"]
    prelu = lambda v: jnp.where(v > 0, v, alpha * v)
    if match_kernel_bf16:                                      # mirror bf16 MXU inputs
        rnd = lambda a: a.astype(jnp.bfloat16).astype(jnp.float32)
    else:                                                      # true all-f32 module math
        rnd = lambda a: a

    img = prelu(mm(rnd(clip_image), rnd(raw["wci"])) + raw["bci"])
    txt = prelu(mm(rnd(clip_text), rnd(raw["wct"])) + raw["bct"])
    comb = jnp.concatenate([img, txt], axis=1)
    fcf = mm(comb, raw["wf"]) + raw["bf"]
    comb1 = jnp.concatenate([qf, fcf], axis=1)
    h1 = mm(comb1, raw["w1"]) + raw["b1"]
    h2 = mm(h1, raw["w2"]) + raw["b2"]
    h3 = mm(h2, raw["w3"]) + raw["b3"]
    return 1.0 / (1.0 + jnp.exp(-h3))


if __name__ == "__main__":
    key = jax.random.PRNGKey(0)
    k_x, k_ci, k_ct, k_p = jax.random.split(key, 4)

    B, C, H, W = 2, 4, 16, 16
    x = jax.random.normal(k_x, (B, C, H, W), jnp.float32)
    clip_image = jax.random.normal(k_ci, (B, 512), jnp.float32)
    clip_text = jax.random.normal(k_ct, (B, 512), jnp.float32)

    raw = init_raw_params(k_p, C)
    folded = fold_params(raw)

    out = fusion_forward(x, clip_image, clip_text, folded)
    out = jax.block_until_ready(out)
    assert out.shape == (B, 1), out.shape

    # Tight check vs a reference mirroring the kernel's bf16 MXU inputs ...
    ref_bf16 = fusion_reference(x, clip_image, clip_text, raw, match_kernel_bf16=True)
    assert bool(jnp.allclose(out, ref_bf16, atol=2e-3, rtol=0.0)), (out, ref_bf16)
    # ... and a looser check vs the true all-f32 module forward (the only
    # deviation is bf16 rounding of the 512-wide clip matmul inputs).
    ref_f32 = fusion_reference(x, clip_image, clip_text, raw, match_kernel_bf16=False)
    assert bool(jnp.allclose(out, ref_f32, atol=2e-2, rtol=0.0)), (out, ref_f32)

    assert bool(jnp.all((out > 0.0) & (out < 1.0)))   # sigmoid range sanity
    print("KERNEL_OK")
</pallas_src>

<mosaic_0001>
module attributes {stable_mosaic.version = 11 : i64} {
  func.func @_fusion_kernel(%arg0: i32, %arg1: memref<16x4xf32, #tpu.memory_space<vmem>>, %arg2: memref<16x512xbf16, #tpu.memory_space<vmem>>, %arg3: memref<512x512xbf16, #tpu.memory_space<vmem>>, %arg4: memref<1x512xf32, #tpu.memory_space<vmem>>, %arg5: memref<1x512xf32, #tpu.memory_space<vmem>>, %arg6: memref<1x4xf32, #tpu.memory_space<vmem>>, %arg7: memref<2xf32, #tpu.memory_space<smem>>, %arg8: memref<1x16xf32, #tpu.memory_space<vmem>>) attributes {dimension_semantics = [#tpu.dimension_semantics<parallel>], iteration_bounds = array<i64: 1>, scalar_prefetch = 0 : i64, scratch_operands = 0 : i64, tpu.core_type = #tpu.core_type<tc>, window_params = [{transform_indices = @transform_0, window_bounds = array<i64: 16, 4>}, {transform_indices = @transform_1, window_bounds = array<i64: 16, 512>}, {pipeline_mode = #tpu.pipeline_mode<synchronous>, transform_indices = @transform_2, window_bounds = array<i64: 512, 512>}, {pipeline_mode = #tpu.pipeline_mode<synchronous>, transform_indices = @transform_3, window_bounds = array<i64: 1, 512>}, {pipeline_mode = #tpu.pipeline_mode<synchronous>, transform_indices = @transform_4, window_bounds = array<i64: 1, 512>}, {pipeline_mode = #tpu.pipeline_mode<synchronous>, transform_indices = @transform_5, window_bounds = array<i64: 1, 4>}, {transform_indices = @transform_6, window_bounds = array<i64: 2>}, {transform_indices = @transform_7, window_bounds = array<i64: 1, 16>}]} {
    %c0 = arith.constant 0 : index
    %0 = memref.load %arg7[%c0] : memref<2xf32, #tpu.memory_space<smem>>
    %c1 = arith.constant 1 : index
    %1 = memref.load %arg7[%c1] : memref<2xf32, #tpu.memory_space<smem>>
    %c0_0 = arith.constant 0 : index
    %c0_1 = arith.constant 0 : index
    %2 = vector.load %arg1[%c0_0, %c0_1] : memref<16x4xf32, #tpu.memory_space<vmem>>, vector<16x4xf32>
    %c0_2 = arith.constant 0 : index
    %c0_3 = arith.constant 0 : index
    %3 = vector.load %arg6[%c0_2, %c0_3] : memref<1x4xf32, #tpu.memory_space<vmem>>, vector<1x4xf32>
    %4 = vector.broadcast %3 : vector<1x4xf32> to vector<16x4xf32>
    %5 = arith.mulf %2, %4 : vector<16x4xf32>
    %cst = arith.constant dense<0.000000e+00> : vector<16xf32>
    %6 = vector.multi_reduction <add>, %5, %cst [1] : vector<16x4xf32> to vector<16xf32>
    %7 = vector.shape_cast %6 : vector<16xf32> to vector<16x1xf32>
    %c0_4 = arith.constant 0 : index
    %c0_5 = arith.constant 0 : index
    %8 = vector.load %arg2[%c0_4, %c0_5] : memref<16x512xbf16, #tpu.memory_space<vmem>>, vector<16x512xbf16>
    %c0_6 = arith.constant 0 : index
    %c0_7 = arith.constant 0 : index
    %9 = vector.load %arg3[%c0_6, %c0_7] : memref<512x512xbf16, #tpu.memory_space<vmem>>, vector<512x512xbf16>
    %cst_8 = arith.constant dense<0.000000e+00> : vector<16x512xf32>
    %10 = tpu.matmul %8, %9, %cst_8 {dimension_numbers = #tpu.dot_dimension_numbers<[1], [0], [0], [1], [0, 0, 1, 1], [], []>} : vector<16x512xbf16>, vector<512x512xbf16>, vector<16x512xf32> -> vector<16x512xf32>
    %c0_9 = arith.constant 0 : index
    %c0_10 = arith.constant 0 : index
    %11 = vector.load %arg4[%c0_9, %c0_10] : memref<1x512xf32, #tpu.memory_space<vmem>>, vector<1x512xf32>
    %12 = vector.broadcast %11 : vector<1x512xf32> to vector<16x512xf32>
    %13 = arith.addf %10, %12 : vector<16x512xf32>
    %cst_11 = arith.constant 0.000000e+00 : f32
    %14 = vector.broadcast %cst_11 : f32 to vector<16x512xf32>
    %15 = arith.cmpf ogt, %13, %14 : vector<16x512xf32>
    %16 = vector.broadcast %0 : f32 to vector<16x512xf32>
    %17 = arith.mulf %16, %13 : vector<16x512xf32>
    %18 = arith.select %15, %13, %17 : vector<16x512xi1>, vector<16x512xf32>
    %c0_12 = arith.constant 0 : index
    %c0_13 = arith.constant 0 : index
    %19 = vector.load %arg5[%c0_12, %c0_13] : memref<1x512xf32, #tpu.memory_space<vmem>>, vector<1x512xf32>
    %20 = vector.broadcast %19 : vector<1x512xf32> to vector<16x512xf32>
    %21 = arith.mulf %18, %20 : vector<16x512xf32>
    %cst_14 = arith.constant dense<0.000000e+00> : vector<16xf32>
    %22 = vector.multi_reduction <add>, %21, %cst_14 [1] : vector<16x512xf32> to vector<16xf32>
    %23 = vector.shape_cast %22 : vector<16xf32> to vector<16x1xf32>
    %24 = arith.addf %7, %23 : vector<16x1xf32>
    %25 = vector.broadcast %1 : f32 to vector<16x1xf32>
    %26 = arith.addf %24, %25 : vector<16x1xf32>
    %cst_15 = arith.constant 0.000000e+00 : f32
    %27 = vector.broadcast %cst_15 : f32 to vector<16x1xf32>
    %28 = arith.subf %27, %26 : vector<16x1xf32>
    %29 = math.exp %28 : vector<16x1xf32>
    %cst_16 = arith.constant 1.000000e+00 : f32
    %30 = vector.broadcast %cst_16 : f32 to vector<16x1xf32>
    %31 = arith.addf %30, %29 : vector<16x1xf32>
    %cst_17 = arith.constant 1.000000e+00 : f32
    %32 = vector.broadcast %cst_17 : f32 to vector<16x1xf32>
    %33 = arith.divf %32, %31 : vector<16x1xf32>
    %34 = vector.shape_cast %33 : vector<16x1xf32> to vector<1x16xf32>
    %c0_18 = arith.constant 0 : index
    %c0_19 = arith.constant 0 : index
    %35 = vector.load %arg8[%c0_18, %c0_19] : memref<1x16xf32, #tpu.memory_space<vmem>>, vector<1x16xf32>
    tpu.vector_store %arg8[%c0_18, %c0_19], %34 {strides = array<i32>} : memref<1x16xf32, #tpu.memory_space<vmem>>, vector<1x16xf32>,
    return
  }
  func.func @transform_0(%arg0: i32) -> (i32, i32) {
    %c0_i32 = arith.constant 0 : i32
    %c0_i32_0 = arith.constant 0 : i32
    return %arg0, %c0_i32 : i32, i32
  }
  func.func @transform_1(%arg0: i32) -> (i32, i32) {
    %c0_i32 = arith.constant 0 : i32
    %c0_i32_0 = arith.constant 0 : i32
    return %arg0, %c0_i32 : i32, i32
  }
  func.func @transform_2(%arg0: i32) -> (i32, i32) {
    %c0_i32 = arith.constant 0 : i32
    %c0_i32_0 = arith.constant 0 : i32
    %c0_i32_1 = arith.constant 0 : i32
    return %c0_i32, %c0_i32_0 : i32, i32
  }
  func.func @transform_3(%arg0: i32) -> (i32, i32) {
    %c0_i32 = arith.constant 0 : i32
    %c0_i32_0 = arith.constant 0 : i32
    %c0_i32_1 = arith.constant 0 : i32
    return %c0_i32, %c0_i32_0 : i32, i32
  }
  func.func @transform_4(%arg0: i32) -> (i32, i32) {
    %c0_i32 = arith.constant 0 : i32
    %c0_i32_0 = arith.constant 0 : i32
    %c0_i32_1 = arith.constant 0 : i32
    return %c0_i32, %c0_i32_0 : i32, i32
  }
  func.func @transform_5(%arg0: i32) -> (i32, i32) {
    %c0_i32 = arith.constant 0 : i32
    %c0_i32_0 = arith.constant 0 : i32
    %c0_i32_1 = arith.constant 0 : i32
    return %c0_i32, %c0_i32_0 : i32, i32
  }
  func.func @transform_6(%arg0: i32) -> i32 {
    %c0_i32 = arith.constant 0 : i32
    %c0_i32_0 = arith.constant 0 : i32
    return %c0_i32 : i32
  }
  func.func @transform_7(%arg0: i32) -> (i32, i32) {
    %c0_i32 = arith.constant 0 : i32
    %c0_i32_0 = arith.constant 0 : i32
    return %arg0, %c0_i32 : i32, i32
  }
}

</mosaic_0001>

<llo_original>
// kernel: tpu_custom_call.1
$region0: #{tpu_custom_call.1}
  #allocation0 [shape = 'u32[]', space=smem, size = 0x4, offset = 0x4, fixed_abs, tag = 'smem constant byte address 0x4 - core index']
  #allocation1 [shape = 'u32[144,128]{1,0:T(1,128)}', space=vmem, size = 0x12000, scoped, tag = 'internal scratch']
  %s0 = inlined_call_operand.vmem [shape: f32[16,4], index: 0, kind: input, shape index: {}]
  %s1 = inlined_call_operand.hbm [shape: bf16[16,512], index: 1, kind: input, shape index: {}]
  %s2 = inlined_call_operand.hbm [shape: bf16[512,512], index: 2, kind: input, shape index: {}]
  %s3 = inlined_call_operand.vmem [shape: f32[1,512], index: 3, kind: input, shape index: {}]
  %s4 = inlined_call_operand.vmem [shape: f32[1,512], index: 4, kind: input, shape index: {}]
  %s5 = inlined_call_operand.vmem [shape: f32[1,4], index: 5, kind: input, shape index: {}]
  %s6 = inlined_call_operand.vmem [shape: f32[2], index: 6, kind: input, shape index: {}]
  %s7 = inlined_call_operand.hbm [shape: f32[1,16], index: 7, kind: output, shape index: {}]
  %s8 = sld [smem:[#allocation0]]
  $region50: #{tpu_custom_call.1} parent=0
    _
  %s10 = ssub.s32 1, %s8
  %s11 = scalar_select 0, %s10, %s8
  $region1: #{tpu_custom_call.1} parent=0
    #allocation2 [shape = 'u8[16384]{0}', space=vmem, size = 0x4000, scoped, tag = 'input window, operand 1, single buffered']
    #allocation3 [shape = 's32[1]{0}', space=sflag, size = 0x4, scoped, tag = 'scoped memory for tpu_custom_call.1']
    #allocation4 [shape = 's32[1]{0}', space=sflag, size = 0x4, scoped, tag = 'scoped memory for tpu_custom_call.1']
    #allocation5 [shape = 's32[1]{0}', space=sflag, size = 0x4, scoped, tag = 'scoped memory for tpu_custom_call.1']
    #allocation6 [shape = 'u8[524288]{0}', space=vmem, size = 0x80000, scoped, tag = 'input window, operand 2, single buffered']
    #allocation7 [shape = 's32[1]{0}', space=sflag, size = 0x4, scoped, tag = 'scoped memory for tpu_custom_call.1']
    #allocation8 [shape = 'u8[512]{0}', space=smem, size = 0x200, scoped, tag = 'input window, operand 6, single buffered']
    #allocation9 [shape = 'u8[512]{0}', space=vmem, size = 0x400, scoped, tag = 'output window, operand 0, single buffered']
    %12 = vsyncpa [#allocation3], 0
    %13 = vsyncpa [#allocation7], 0
    %14 = vsyncpa [#allocation5], 0
    %15 = vsyncpa [#allocation4], 0
    // Predicated region
    $region2: #{tpu_custom_call.1} parent=1 // pred_check
      _
    $region3: #{tpu_custom_call.1} parent=1 // pred_check_branch
      %17 = sbr.rel (0) target = $region5
    $region4: #{tpu_custom_call.1} parent=1 // pred_region
      _
    $region5: #{tpu_custom_call.1} parent=1 // pred_fallthru
      _
    // Predicated region
    $region6: #{tpu_custom_call.1} parent=1 // pred_check
      _
    $region7: #{tpu_custom_call.1} parent=1 // pred_check_branch
      %19 = sbr.rel (0) target = $region9
    $region8: #{tpu_custom_call.1} parent=1 // pred_region
      %s21 = ssub.s32 512, 512
      %22 = vsyncadd [#allocation3], %s21
      %s23 = sshll.u32 [#allocation2], 4
      %s24 = int_to_ptr.vmem [resolvable:$true] %s23
      %29 = dma.hbm_to_vmem [thread:$0]  %s1, 512, %s24, [#allocation3], 256, 256, 16
    $region9: #{tpu_custom_call.1} parent=1 // pred_fallthru
      _
    // Predicated region
    $region10: #{tpu_custom_call.1} parent=1 // pred_check
      _
    $region11: #{tpu_custom_call.1} parent=1 // pred_check_branch
      %31 = sbr.rel (0) target = $region13
    $region12: #{tpu_custom_call.1} parent=1 // pred_region
      %s33 = ssub.s32 16384, 16384
      %34 = vsyncadd [#allocation7], %s33
      %s35 = sshll.u32 [#allocation6], 4
      %s36 = int_to_ptr.vmem [resolvable:$true] %s35
      %41 = dma.hbm_to_vmem [thread:$0]  %s2, 16384, %s36, [#allocation7], 256, 256, 16
    $region13: #{tpu_custom_call.1} parent=1 // pred_fallthru
      _
    // Predicated region
    $region14: #{tpu_custom_call.1} parent=1 // pred_check
      _
    $region15: #{tpu_custom_call.1} parent=1 // pred_check_branch
      %43 = sbr.rel (0) target = $region17
    $region16: #{tpu_custom_call.1} parent=1 // pred_region
      _
    $region17: #{tpu_custom_call.1} parent=1 // pred_fallthru
      _
    // Predicated region
    $region18: #{tpu_custom_call.1} parent=1 // pred_check
      _
    $region19: #{tpu_custom_call.1} parent=1 // pred_check_branch
      %45 = sbr.rel (0) target = $region21
    $region20: #{tpu_custom_call.1} parent=1 // pred_region
      _
    $region21: #{tpu_custom_call.1} parent=1 // pred_fallthru
      _
    // Predicated region
    $region22: #{tpu_custom_call.1} parent=1 // pred_check
      _
    $region23: #{tpu_custom_call.1} parent=1 // pred_check_branch
      %47 = sbr.rel (0) target = $region25
    $region24: #{tpu_custom_call.1} parent=1 // pred_region
      _
    $region25: #{tpu_custom_call.1} parent=1 // pred_fallthru
      _
    // Predicated region
    $region26: #{tpu_custom_call.1} parent=1 // pred_check
      _
    $region27: #{tpu_custom_call.1} parent=1 // pred_check_branch
      %49 = sbr.rel (0) target = $region29
    $region28: #{tpu_custom_call.1} parent=1 // pred_region
      %s51 = ssub.s32 16, 16
      %52 = vsyncadd [#allocation5], %s51
      %s54 = sshll.u32 %s6, 4
      %s55 = int_to_ptr.vmem [resolvable:$true] %s54
      %57 = dma.vmem_to_smem %s55, 16, [#allocation8], [#allocation5]
    $region29: #{tpu_custom_call.1} parent=1 // pred_fallthru
      _
    // Predicated region
    $region30: #{tpu_custom_call.1} parent=1 // pred_check
      _
    $region31: #{tpu_custom_call.1} parent=1 // pred_check_branch
      %59 = sbr.rel (0) target = $region33
    $region32: #{tpu_custom_call.1} parent=1 // pred_region
      %60 = dma.done [#allocation3], 512
    $region33: #{tpu_custom_call.1} parent=1 // pred_fallthru
      _
    // Predicated region
    $region34: #{tpu_custom_call.1} parent=1 // pred_check
      _
    $region35: #{tpu_custom_call.1} parent=1 // pred_check_branch
      %62 = sbr.rel (0) target = $region37
    $region36: #{tpu_custom_call.1} parent=1 // pred_region
      %63 = dma.done [#allocation7], 16384
    $region37: #{tpu_custom_call.1} parent=1 // pred_fallthru
      _
    // Predicated region
    $region38: #{tpu_custom_call.1} parent=1 // pred_check
      _
    $region39: #{tpu_custom_call.1} parent=1 // pred_check_branch
      %65 = sbr.rel (0) target = $region41
    $region40: #{tpu_custom_call.1} parent=1 // pred_region
      %66 = dma.done [#allocation5], 16
    $region41: #{tpu_custom_call.1} parent=1 // pred_fallthru
      _
    %67 = sfence
    %s68 = sld [smem:[#allocation8]]
    %s69 = sld [smem:[#allocation8 + $0x1]]
    %v70 = vld [vmem:[%s0] sm:$0xff]
    %v71 = vld [vmem:[%s0 + $0x8] sm:$0xff]
    %v72 = vld [vmem:[%s5] sm:$0x1]
    %v74 = vlaneseq
    %v75 = vshrl.u32 %v74, 7
    %v76 = vsub.s32 0, %v75
    %v77 = vrot.slane %v72, %v76
    %v79 = vmul.f32 %v70, %v77
    %v80 = vmul.f32 %v71, %v77
    %vm81 = vcmask 31744
    %v82 = vsel %vm81, %v79, 0.0
    %83 = vadd.xlane.f32.xlu0 %v82
    %v84 = vpop.xlane.xlu0 %83
    %v85 = vsel %vm81, %v80, 0.0
    %86 = vadd.xlane.f32.xlu0 %v85
    %v87 = vpop.xlane.xlu0 %86
    %v88 = vld [vmem:[#allocation2] sm:$0xff]
    %v89 = vld [vmem:[#allocation2 + $0x8] sm:$0xff]
    %v90 = vld [vmem:[#allocation2 + $0x10] sm:$0xff]
    %v91 = vld [vmem:[#allocation2 + $0x18] sm:$0xff]
    %v92 = vld [vmem:[#allocation6] sm:$0xff]
    %v93 = vld [vmem:[#allocation6 + $0x8] sm:$0xff]
    %v94 = vld [vmem:[#allocation6 + $0x10] sm:$0xff]
    %v95 = vld [vmem:[#allocation6 + $0x18] sm:$0xff]
    %v96 = vld [vmem:[#allocation6 + $0x20] sm:$0xff]
    %v97 = vld [vmem:[#allocation6 + $0x28] sm:$0xff]
    %v98 = vld [vmem:[#allocation6 + $0x30] sm:$0xff]
    %v99 = vld [vmem:[#allocation6 + $0x38] sm:$0xff]
    %v100 = vld [vmem:[#allocation6 + $0x40] sm:$0xff]
    %v101 = vld [vmem:[#allocation6 + $0x48] sm:$0xff]
    %v102 = vld [vmem:[#allocation6 + $0x50] sm:$0xff]
    %v103 = vld [vmem:[#allocation6 + $0x58] sm:$0xff]
    %v104 = vld [vmem:[#allocation6 + $0x60] sm:$0xff]
    %v105 = vld [vmem:[#allocation6 + $0x68] sm:$0xff]
    %v106 = vld [vmem:[#allocation6 + $0x70] sm:$0xff]
    %v107 = vld [vmem:[#allocation6 + $0x78] sm:$0xff]
    %v108 = vld [vmem:[#allocation6 + $0x80] sm:$0xff]
    %v109 = vld [vmem:[#allocation6 + $0x88] sm:$0xff]
    %v110 = vld [vmem:[#allocation6 + $0x90] sm:$0xff]
    %v111 = vld [vmem:[#allocation6 + $0x98] sm:$0xff]
    %v112 = vld [vmem:[#allocation6 + $0xa0] sm:$0xff]
    %v113 = vld [vmem:[#allocation6 + $0xa8] sm:$0xff]
    %v114 = vld [vmem:[#allocation6 + $0xb0] sm:$0xff]
    %v115 = vld [vmem:[#allocation6 + $0xb8] sm:$0xff]
    %v116 = vld [vmem:[#allocation6 + $0xc0] sm:$0xff]
    %v117 = vld [vmem:[#allocation6 + $0xc8] sm:$0xff]
    %v118 = vld [vmem:[#allocation6 + $0xd0] sm:$0xff]
    %v119 = vld [vmem:[#allocation6 + $0xd8] sm:$0xff]
    %v120 = vld [vmem:[#allocation6 + $0xe0] sm:$0xff]
    %v121 = vld [vmem:[#allocation6 + $0xe8] sm:$0xff]
    %v122 = vld [vmem:[#allocation6 + $0xf0] sm:$0xff]
    %v123 = vld [vmem:[#allocation6 + $0xf8] sm:$0xff]
    %v124 = vld [vmem:[#allocation6 + $0x100] sm:$0xff]
    %v125 = vld [vmem:[#allocation6 + $0x108] sm:$0xff]
    %v126 = vld [vmem:[#allocation6 + $0x110] sm:$0xff]
    %v127 = vld [vmem:[#allocation6 + $0x118] sm:$0xff]
    %v128 = vld [vmem:[#allocation6 + $0x120] sm:$0xff]
    %v129 = vld [vmem:[#allocation6 + $0x128] sm:$0xff]
    %v130 = vld [vmem:[#allocation6 + $0x130] sm:$0xff]
    %v131 = vld [vmem:[#allocation6 + $0x138] sm:$0xff]
    %v132 = vld [vmem:[#allocation6 + $0x140] sm:$0xff]
    %v133 = vld [vmem:[#allocation6 + $0x148] sm:$0xff]
    %v134 = vld [vmem:[#allocation6 + $0x150] sm:$0xff]
    %v135 = vld [vmem:[#allocation6 + $0x158] sm:$0xff]
    %v136 = vld [vmem:[#allocation6 + $0x160] sm:$0xff]
    %v137 = vld [vmem:[#allocation6 + $0x168] sm:$0xff]
    %v138 = vld [vmem:[#allocation6 + $0x170] sm:$0xff]
    %v139 = vld [vmem:[#allocation6 + $0x178] sm:$0xff]
    %v140 = vld [vmem:[#allocation6 + $0x180] sm:$0xff]
    %v141 = vld [vmem:[#allocation6 + $0x188] sm:$0xff]
    %v142 = vld [vmem:[#allocation6 + $0x190] sm:$0xff]
    %v143 = vld [vmem:[#allocation6 + $0x198] sm:$0xff]
    %v144 = vld [vmem:[#allocation6 + $0x1a0] sm:$0xff]
    %v145 = vld [vmem:[#allocation6 + $0x1a8] sm:$0xff]
    %v146 = vld [vmem:[#allocation6 + $0x1b0] sm:$0xff]
    %v147 = vld [vmem:[#allocation6 + $0x1b8] sm:$0xff]
    %v148 = vld [vmem:[#allocation6 + $0x1c0] sm:$0xff]
    %v149 = vld [vmem:[#allocation6 + $0x1c8] sm:$0xff]
    %v150 = vld [vmem:[#allocation6 + $0x1d0] sm:$0xff]
    %v151 = vld [vmem:[#allocation6 + $0x1d8] sm:$0xff]
    %v152 = vld [vmem:[#allocation6 + $0x1e0] sm:$0xff]
    %v153 = vld [vmem:[#allocation6 + $0x1e8] sm:$0xff]
    %v154 = vld [vmem:[#allocation6 + $0x1f0] sm:$0xff]
    %v155 = vld [vmem:[#allocation6 + $0x1f8] sm:$0xff]
    %v156 = vld [vmem:[#allocation6 + $0x200] sm:$0xff]
    %v157 = vld [vmem:[#allocation6 + $0x208] sm:$0xff]
    %v158 = vld [vmem:[#allocation6 + $0x210] sm:$0xff]
    %v159 = vld [vmem:[#allocation6 + $0x218] sm:$0xff]
    %v160 = vld [vmem:[#allocation6 + $0x220] sm:$0xff]
    %v161 = vld [vmem:[#allocation6 + $0x228] sm:$0xff]
    %v162 = vld [vmem:[#allocation6 + $0x230] sm:$0xff]
    %v163 = vld [vmem:[#allocation6 + $0x238] sm:$0xff]
    %v164 = vld [vmem:[#allocation6 + $0x240] sm:$0xff]
    %v165 = vld [vmem:[#allocation6 + $0x248] sm:$0xff]
    %v166 = vld [vmem:[#allocation6 + $0x250] sm:$0xff]
    %v167 = vld [vmem:[#allocation6 + $0x258] sm:$0xff]
    %v168 = vld [vmem:[#allocation6 + $0x260] sm:$0xff]
    %v169 = vld [vmem:[#allocation6 + $0x268] sm:$0xff]
    %v170 = vld [vmem:[#allocation6 + $0x270] sm:$0xff]
    %v171 = vld [vmem:[#allocation6 + $0x278] sm:$0xff]
    %v172 = vld [vmem:[#allocation6 + $0x280] sm:$0xff]
    %v173 = vld [vmem:[#allocation6 + $0x288] sm:$0xff]
    %v174 = vld [vmem:[#allocation6 + $0x290] sm:$0xff]
    %v175 = vld [vmem:[#allocation6 + $0x298] sm:$0xff]
    %v176 = vld [vmem:[#allocation6 + $0x2a0] sm:$0xff]
    %v177 = vld [vmem:[#allocation6 + $0x2a8] sm:$0xff]
    %v178 = vld [vmem:[#allocation6 + $0x2b0] sm:$0xff]
    %v179 = vld [vmem:[#allocation6 + $0x2b8] sm:$0xff]
    %v180 = vld [vmem:[#allocation6 + $0x2c0] sm:$0xff]
    %v181 = vld [vmem:[#allocation6 + $0x2c8] sm:$0xff]
    %v182 = vld [vmem:[#allocation6 + $0x2d0] sm:$0xff]
    %v183 = vld [vmem:[#allocation6 + $0x2d8] sm:$0xff]
    %v184 = vld [vmem:[#allocation6 + $0x2e0] sm:$0xff]
    %v185 = vld [vmem:[#allocation6 + $0x2e8] sm:$0xff]
    %v186 = vld [vmem:[#allocation6 + $0x2f0] sm:$0xff]
    %v187 = vld [vmem:[#allocation6 + $0x2f8] sm:$0xff]
    %v188 = vld [vmem:[#allocation6 + $0x300] sm:$0xff]
    %v189 = vld [vmem:[#allocation6 + $0x308] sm:$0xff]
    %v190 = vld [vmem:[#allocation6 + $0x310] sm:$0xff]
    %v191 = vld [vmem:[#allocation6 + $0x318] sm:$0xff]
    %v192 = vld [vmem:[#allocation6 + $0x320] sm:$0xff]
    %v193 = vld [vmem:[#allocation6 + $0x328] sm:$0xff]
    %v194 = vld [vmem:[#allocation6 + $0x330] sm:$0xff]
    %v195 = vld [vmem:[#allocation6 + $0x338] sm:$0xff]
    %v196 = vld [vmem:[#allocation6 + $0x340] sm:$0xff]
    %v197 = vld [vmem:[#allocation6 + $0x348] sm:$0xff]
    %v198 = vld [vmem:[#allocation6 + $0x350] sm:$0xff]
    %v199 = vld [vmem:[#allocation6 + $0x358] sm:$0xff]
    %v200 = vld [vmem:[#allocation6 + $0x360] sm:$0xff]
    %v201 = vld [vmem:[#allocation6 + $0x368] sm:$0xff]
    %v202 = vld [vmem:[#allocation6 + $0x370] sm:$0xff]
    %v203 = vld [vmem:[#allocation6 + $0x378] sm:$0xff]
    %v204 = vld [vmem:[#allocation6 + $0x380] sm:$0xff]
    %v205 = vld [vmem:[#allocation6 + $0x388] sm:$0xff]
    %v206 = vld [vmem:[#allocation6 + $0x390] sm:$0xff]
    %v207 = vld [vmem:[#allocation6 + $0x398] sm:$0xff]
    %v208 = vld [vmem:[#allocation6 + $0x3a0] sm:$0xff]
    %v209 = vld [vmem:[#allocation6 + $0x3a8] sm:$0xff]
    %v210 = vld [vmem:[#allocation6 + $0x3b0] sm:$0xff]
    %v211 = vld [vmem:[#allocation6 + $0x3b8] sm:$0xff]
    %v212 = vld [vmem:[#allocation6 + $0x3c0] sm:$0xff]
    %v213 = vld [vmem:[#allocation6 + $0x3c8] sm:$0xff]
    %v214 = vld [vmem:[#allocation6 + $0x3d0] sm:$0xff]
    %v215 = vld [vmem:[#allocation6 + $0x3d8] sm:$0xff]
    %v216 = vld [vmem:[#allocation6 + $0x3e0] sm:$0xff]
    %v217 = vld [vmem:[#allocation6 + $0x3e8] sm:$0xff]
    %v218 = vld [vmem:[#allocation6 + $0x3f0] sm:$0xff]
    %v219 = vld [vmem:[#allocation6 + $0x3f8] sm:$0xff]
    %v220 = vld [vmem:[%s3] sm:$0xf]
    %v222 = vlaneseq
    %v223 = vshrl.u32 %v222, 7
    %v224 = vsub.s32 0, %v223
    %v225 = vrot.slane %v220, %v224
    %v226 = vlaneseq
    %v227 = vshrl.u32 %v226, 7
    %v228 = vsub.s32 1, %v227
    %v229 = vrot.slane %v220, %v228
    %v230 = vlaneseq
    %v231 = vshrl.u32 %v230, 7
    %v232 = vsub.s32 2, %v231
    %v233 = vrot.slane %v220, %v232
    %v234 = vlaneseq
    %v235 = vshrl.u32 %v234, 7
    %v236 = vsub.s32 3, %v235
    %v237 = vrot.slane %v220, %v236
    %v246 = vunpack.c.l.b16 %v88
    %v247 = vunpack.c.h.b16 %v88
    %v248 = vunpack.c.l.b16 %v89
    %v249 = vunpack.c.h.b16 %v89
    %v250 = vunpack.c.l.b16 %v90
    %v251 = vunpack.c.h.b16 %v90
    %v252 = vunpack.c.l.b16 %v91
    %v253 = vunpack.c.h.b16 %v91
    %v254 = vpack.c.b16 %v250, %v246
    %v255 = vpack.c.b16 %v251, %v247
    %v256 = vpack.c.b16 %v252, %v248
    %v257 = vpack.c.b16 %v253, %v249
    %v390 = vunpack.c.l.b16 %v92
    %v391 = vunpack.c.h.b16 %v92
    %v392 = vunpack.c.l.b16 %v93
    %v393 = vunpack.c.h.b16 %v93
    %v394 = vunpack.c.l.b16 %v94
    %v395 = vunpack.c.h.b16 %v94
    %v396 = vunpack.c.l.b16 %v95
    %v397 = vunpack.c.h.b16 %v95
    %v398 = vunpack.c.l.b16 %v96
    %v399 = vunpack.c.h.b16 %v96
    %v400 = vunpack.c.l.b16 %v97
    %v401 = vunpack.c.h.b16 %v97
    %v402 = vunpack.c.l.b16 %v98
    %v403 = vunpack.c.h.b16 %v98
    %v404 = vunpack.c.l.b16 %v99
    %v405 = vunpack.c.h.b16 %v99
    %v406 = vunpack.c.l.b16 %v100
    %v407 = vunpack.c.h.b16 %v100
    %v408 = vunpack.c.l.b16 %v101
    %v409 = vunpack.c.h.b16 %v101
    %v410 = vunpack.c.l.b16 %v102
    %v411 = vunpack.c.h.b16 %v102
    %v412 = vunpack.c.l.b16 %v103
    %v413 = vunpack.c.h.b16 %v103
    %v414 = vunpack.c.l.b16 %v104
    %v415 = vunpack.c.h.b16 %v104
    %v416 = vunpack.c.l.b16 %v105
    %v417 = vunpack.c.h.b16 %v105
    %v418 = vunpack.c.l.b16 %v106
    %v419 = vunpack.c.h.b16 %v106
    %v420 = vunpack.c.l.b16 %v107
    %v421 = vunpack.c.h.b16 %v107
    %v422 = vunpack.c.l.b16 %v108
    %v423 = vunpack.c.h.b16 %v108
    %v424 = vunpack.c.l.b16 %v109
    %v425 = vunpack.c.h.b16 %v109
    %v426 = vunpack.c.l.b16 %v110
    %v427 = vunpack.c.h.b16 %v110
    %v428 = vunpack.c.l.b16 %v111
    %v429 = vunpack.c.h.b16 %v111
    %v430 = vunpack.c.l.b16 %v112
    %v431 = vunpack.c.h.b16 %v112
    %v432 = vunpack.c.l.b16 %v113
    %v433 = vunpack.c.h.b16 %v113
    %v434 = vunpack.c.l.b16 %v114
    %v435 = vunpack.c.h.b16 %v114
    %v436 = vunpack.c.l.b16 %v115
    %v437 = vunpack.c.h.b16 %v115
    %v438 = vunpack.c.l.b16 %v116
    %v439 = vunpack.c.h.b16 %v116
    %v440 = vunpack.c.l.b16 %v117
    %v441 = vunpack.c.h.b16 %v117
    %v442 = vunpack.c.l.b16 %v118
    %v443 = vunpack.c.h.b16 %v118
    %v444 = vunpack.c.l.b16 %v119
    %v445 = vunpack.c.h.b16 %v119
    %v446 = vunpack.c.l.b16 %v120
    %v447 = vunpack.c.h.b16 %v120
    %v448 = vunpack.c.l.b16 %v121
    %v449 = vunpack.c.h.b16 %v121
    %v450 = vunpack.c.l.b16 %v122
    %v451 = vunpack.c.h.b16 %v122
    %v452 = vunpack.c.l.b16 %v123
    %v453 = vunpack.c.h.b16 %v123
    %v454 = vunpack.c.l.b16 %v124
    %v455 = vunpack.c.h.b16 %v124
    %v456 = vunpack.c.l.b16 %v125
    %v457 = vunpack.c.h.b16 %v125
    %v458 = vunpack.c.l.b16 %v126
    %v459 = vunpack.c.h.b16 %v126
    %v460 = vunpack.c.l.b16 %v127
    %v461 = vunpack.c.h.b16 %v127
    %v462 = vunpack.c.l.b16 %v128
    %v463 = vunpack.c.h.b16 %v128
    %v464 = vunpack.c.l.b16 %v129
    %v465 = vunpack.c.h.b16 %v129
    %v466 = vunpack.c.l.b16 %v130
    %v467 = vunpack.c.h.b16 %v130
    %v468 = vunpack.c.l.b16 %v131
    %v469 = vunpack.c.h.b16 %v131
    %v470 = vunpack.c.l.b16 %v132
    %v471 = vunpack.c.h.b16 %v132
    %v472 = vunpack.c.l.b16 %v133
    %v473 = vunpack.c.h.b16 %v133
    %v474 = vunpack.c.l.b16 %v134
    %v475 = vunpack.c.h.b16 %v134
    %v476 = vunpack.c.l.b16 %v135
    %v477 = vunpack.c.h.b16 %v135
    %v478 = vunpack.c.l.b16 %v136
    %v479 = vunpack.c.h.b16 %v136
    %v480 = vunpack.c.l.b16 %v137
    %v481 = vunpack.c.h.b16 %v137
    %v482 = vunpack.c.l.b16 %v138
    %v483 = vunpack.c.h.b16 %v138
    %v484 = vunpack.c.l.b16 %v139
    %v485 = vunpack.c.h.b16 %v139
    %v486 = vunpack.c.l.b16 %v140
    %v487 = vunpack.c.h.b16 %v140
    %v488 = vunpack.c.l.b16 %v141
    %v489 = vunpack.c.h.b16 %v141
    %v490 = vunpack.c.l.b16 %v142
    %v491 = vunpack.c.h.b16 %v142
    %v492 = vunpack.c.l.b16 %v143
    %v493 = vunpack.c.h.b16 %v143
    %v494 = vunpack.c.l.b16 %v144
    %v495 = vunpack.c.h.b16 %v144
    %v496 = vunpack.c.l.b16 %v145
    %v497 = vunpack.c.h.b16 %v145
    %v498 = vunpack.c.l.b16 %v146
    %v499 = vunpack.c.h.b16 %v146
    %v500 = vunpack.c.l.b16 %v147
    %v501 = vunpack.c.h.b16 %v147
    %v502 = vunpack.c.l.b16 %v148
    %v503 = vunpack.c.h.b16 %v148
    %v504 = vunpack.c.l.b16 %v149
    %v505 = vunpack.c.h.b16 %v149
    %v506 = vunpack.c.l.b16 %v150
    %v507 = vunpack.c.h.b16 %v150
    %v508 = vunpack.c.l.b16 %v151
    %v509 = vunpack.c.h.b16 %v151
    %v510 = vunpack.c.l.b16 %v152
    %v511 = vunpack.c.h.b16 %v152
    %v512 = vunpack.c.l.b16 %v153
    %v513 = vunpack.c.h.b16 %v153
    %v514 = vunpack.c.l.b16 %v154
    %v515 = vunpack.c.h.b16 %v154
    %v516 = vunpack.c.l.b16 %v155
    %v517 = vunpack.c.h.b16 %v155
    %v518 = vunpack.c.l.b16 %v156
    %v519 = vunpack.c.h.b16 %v156
    %v520 = vunpack.c.l.b16 %v157
    %v521 = vunpack.c.h.b16 %v157
    %v522 = vunpack.c.l.b16 %v158
    %v523 = vunpack.c.h.b16 %v158
    %v524 = vunpack.c.l.b16 %v159
    %v525 = vunpack.c.h.b16 %v159
    %v526 = vunpack.c.l.b16 %v160
    %v527 = vunpack.c.h.b16 %v160
    %v528 = vunpack.c.l.b16 %v161
    %v529 = vunpack.c.h.b16 %v161
    %v530 = vunpack.c.l.b16 %v162
    %v531 = vunpack.c.h.b16 %v162
    %v532 = vunpack.c.l.b16 %v163
    %v533 = vunpack.c.h.b16 %v163
    %v534 = vunpack.c.l.b16 %v164
    %v535 = vunpack.c.h.b16 %v164
    %v536 = vunpack.c.l.b16 %v165
    %v537 = vunpack.c.h.b16 %v165
    %v538 = vunpack.c.l.b16 %v166
    %v539 = vunpack.c.h.b16 %v166
    %v540 = vunpack.c.l.b16 %v167
    %v541 = vunpack.c.h.b16 %v167
    %v542 = vunpack.c.l.b16 %v168
    %v543 = vunpack.c.h.b16 %v168
    %v544 = vunpack.c.l.b16 %v169
    %v545 = vunpack.c.h.b16 %v169
    %v546 = vunpack.c.l.b16 %v170
    %v547 = vunpack.c.h.b16 %v170
    %v548 = vunpack.c.l.b16 %v171
    %v549 = vunpack.c.h.b16 %v171
    %v550 = vunpack.c.l.b16 %v172
    %v551 = vunpack.c.h.b16 %v172
    %v552 = vunpack.c.l.b16 %v173
    %v553 = vunpack.c.h.b16 %v173
    %v554 = vunpack.c.l.b16 %v174
    %v555 = vunpack.c.h.b16 %v174
    %v556 = vunpack.c.l.b16 %v175
    %v557 = vunpack.c.h.b16 %v175
    %v558 = vunpack.c.l.b16 %v176
    %v559 = vunpack.c.h.b16 %v176
    %v560 = vunpack.c.l.b16 %v177
    %v561 = vunpack.c.h.b16 %v177
    %v562 = vunpack.c.l.b16 %v178
    %v563 = vunpack.c.h.b16 %v178
    %v564 = vunpack.c.l.b16 %v179
    %v565 = vunpack.c.h.b16 %v179
    %v566 = vunpack.c.l.b16 %v180
    %v567 = vunpack.c.h.b16 %v180
    %v568 = vunpack.c.l.b16 %v181
    %v569 = vunpack.c.h.b16 %v181
    %v570 = vunpack.c.l.b16 %v182
    %v571 = vunpack.c.h.b16 %v182
    %v572 = vunpack.c.l.b16 %v183
    %v573 = vunpack.c.h.b16 %v183
    %v574 = vunpack.c.l.b16 %v184
    %v575 = vunpack.c.h.b16 %v184
    %v576 = vunpack.c.l.b16 %v185
    %v577 = vunpack.c.h.b16 %v185
    %v578 = vunpack.c.l.b16 %v186
    %v579 = vunpack.c.h.b16 %v186
    %v580 = vunpack.c.l.b16 %v187
    %v581 = vunpack.c.h.b16 %v187
    %v582 = vunpack.c.l.b16 %v188
    %v583 = vunpack.c.h.b16 %v188
    %v584 = vunpack.c.l.b16 %v189
    %v585 = vunpack.c.h.b16 %v189
    %v586 = vunpack.c.l.b16 %v190
    %v587 = vunpack.c.h.b16 %v190
    %v588 = vunpack.c.l.b16 %v191
    %v589 = vunpack.c.h.b16 %v191
    %v590 = vunpack.c.l.b16 %v192
    %v591 = vunpack.c.h.b16 %v192
    %v592 = vunpack.c.l.b16 %v193
    %v593 = vunpack.c.h.b16 %v193
    %v594 = vunpack.c.l.b16 %v194
    %v595 = vunpack.c.h.b16 %v194
    %v596 = vunpack.c.l.b16 %v195
    %v597 = vunpack.c.h.b16 %v195
    %v598 = vunpack.c.l.b16 %v196
    %v599 = vunpack.c.h.b16 %v196
    %v600 = vunpack.c.l.b16 %v197
    %v601 = vunpack.c.h.b16 %v197
    %v602 = vunpack.c.l.b16 %v198
    %v603 = vunpack.c.h.b16 %v198
    %v604 = vunpack.c.l.b16 %v199
    %v605 = vunpack.c.h.b16 %v199
    %v606 = vunpack.c.l.b16 %v200
    %v607 = vunpack.c.h.b16 %v200
    %v608 = vunpack.c.l.b16 %v201
    %v609 = vunpack.c.h.b16 %v201
    %v610 = vunpack.c.l.b16 %v202
    %v611 = vunpack.c.h.b16 %v202
    %v612 = vunpack.c.l.b16 %v203
    %v613 = vunpack.c.h.b16 %v203
    %v614 = vunpack.c.l.b16 %v204
    %v615 = vunpack.c.h.b16 %v204
    %v616 = vunpack.c.l.b16 %v205
    %v617 = vunpack.c.h.b16 %v205
    %v618 = vunpack.c.l.b16 %v206
    %v619 = vunpack.c.h.b16 %v206
    %v620 = vunpack.c.l.b16 %v207
    %v621 = vunpack.c.h.b16 %v207
    %v622 = vunpack.c.l.b16 %v208
    %v623 = vunpack.c.h.b16 %v208
    %v624 = vunpack.c.l.b16 %v209
    %v625 = vunpack.c.h.b16 %v209
    %v626 = vunpack.c.l.b16 %v210
    %v627 = vunpack.c.h.b16 %v210
    %v628 = vunpack.c.l.b16 %v211
    %v629 = vunpack.c.h.b16 %v211
    %v630 = vunpack.c.l.b16 %v212
    %v631 = vunpack.c.h.b16 %v212
    %v632 = vunpack.c.l.b16 %v213
    %v633 = vunpack.c.h.b16 %v213
    %v634 = vunpack.c.l.b16 %v214
    %v635 = vunpack.c.h.b16 %v214
    %v636 = vunpack.c.l.b16 %v215
    %v637 = vunpack.c.h.b16 %v215
    %v638 = vunpack.c.l.b16 %v216
    %v639 = vunpack.c.h.b16 %v216
    %v640 = vunpack.c.l.b16 %v217
    %v641 = vunpack.c.h.b16 %v217
    %v642 = vunpack.c.l.b16 %v218
    %v643 = vunpack.c.h.b16 %v218
    %v644 = vunpack.c.l.b16 %v219
    %v645 = vunpack.c.h.b16 %v219
    %v646 = vpack.c.b16 %v394, %v390
    %v647 = vpack.c.b16 %v395, %v391
    %v648 = vpack.c.b16 %v396, %v392
    %v649 = vpack.c.b16 %v397, %v393
    %v650 = vpack.c.b16 %v402, %v398
    %v651 = vpack.c.b16 %v403, %v399
    %v652 = vpack.c.b16 %v404, %v400
    %v653 = vpack.c.b16 %v405, %v401
    %v654 = vpack.c.b16 %v410, %v406
    %v655 = vpack.c.b16 %v411, %v407
    %v656 = vpack.c.b16 %v412, %v408
    %v657 = vpack.c.b16 %v413, %v409
    %v658 = vpack.c.b16 %v418, %v414
    %v659 = vpack.c.b16 %v419, %v415
    %v660 = vpack.c.b16 %v420, %v416
    %v661 = vpack.c.b16 %v421, %v417
    %v662 = vpack.c.b16 %v426, %v422
    %v663 = vpack.c.b16 %v427, %v423
    %v664 = vpack.c.b16 %v428, %v424
    %v665 = vpack.c.b16 %v429, %v425
    %v666 = vpack.c.b16 %v434, %v430
    %v667 = vpack.c.b16 %v435, %v431
    %v668 = vpack.c.b16 %v436, %v432
    %v669 = vpack.c.b16 %v437, %v433
    %v670 = vpack.c.b16 %v442, %v438
    %v671 = vpack.c.b16 %v443, %v439
    %v672 = vpack.c.b16 %v444, %v440
    %v673 = vpack.c.b16 %v445, %v441
    %v674 = vpack.c.b16 %v450, %v446
    %v675 = vpack.c.b16 %v451, %v447
    %v676 = vpack.c.b16 %v452, %v448
    %v677 = vpack.c.b16 %v453, %v449
    %v678 = vpack.c.b16 %v458, %v454
    %v679 = vpack.c.b16 %v459, %v455
    %v680 = vpack.c.b16 %v460, %v456
    %v681 = vpack.c.b16 %v461, %v457
    %v682 = vpack.c.b16 %v466, %v462
    %v683 = vpack.c.b16 %v467, %v463
    %v684 = vpack.c.b16 %v468, %v464
    %v685 = vpack.c.b16 %v469, %v465
    %v686 = vpack.c.b16 %v474, %v470
    %v687 = vpack.c.b16 %v475, %v471
    %v688 = vpack.c.b16 %v476, %v472
    %v689 = vpack.c.b16 %v477, %v473
    %v690 = vpack.c.b16 %v482, %v478
    %v691 = vpack.c.b16 %v483, %v479
    %v692 = vpack.c.b16 %v484, %v480
    %v693 = vpack.c.b16 %v485, %v481
    %v694 = vpack.c.b16 %v490, %v486
    %v695 = vpack.c.b16 %v491, %v487
    %v696 = vpack.c.b16 %v492, %v488
    %v697 = vpack.c.b16 %v493, %v489
    %v698 = vpack.c.b16 %v498, %v494
    %v699 = vpack.c.b16 %v499, %v495
    %v700 = vpack.c.b16 %v500, %v496
    %v701 = vpack.c.b16 %v501, %v497
    %v702 = vpack.c.b16 %v506, %v502
    %v703 = vpack.c.b16 %v507, %v503
    %v704 = vpack.c.b16 %v508, %v504
    %v705 = vpack.c.b16 %v509, %v505
    %v706 = vpack.c.b16 %v514, %v510
    %v707 = vpack.c.b16 %v515, %v511
    %v708 = vpack.c.b16 %v516, %v512
    %v709 = vpack.c.b16 %v517, %v513
    %v710 = vpack.c.b16 %v522, %v518
    %v711 = vpack.c.b16 %v523, %v519
    %v712 = vpack.c.b16 %v524, %v520
    %v713 = vpack.c.b16 %v525, %v521
    %v714 = vpack.c.b16 %v530, %v526
    %v715 = vpack.c.b16 %v531, %v527
    %v716 = vpack.c.b16 %v532, %v528
    %v717 = vpack.c.b16 %v533, %v529
    %v718 = vpack.c.b16 %v538, %v534
    %v719 = vpack.c.b16 %v539, %v535
    %v720 = vpack.c.b16 %v540, %v536
    %v721 = vpack.c.b16 %v541, %v537
    %v722 = vpack.c.b16 %v546, %v542
    %v723 = vpack.c.b16 %v547, %v543
    %v724 = vpack.c.b16 %v548, %v544
    %v725 = vpack.c.b16 %v549, %v545
    %v726 = vpack.c.b16 %v554, %v550
    %v727 = vpack.c.b16 %v555, %v551
    %v728 = vpack.c.b16 %v556, %v552
    %v729 = vpack.c.b16 %v557, %v553
    %v730 = vpack.c.b16 %v562, %v558
    %v731 = vpack.c.b16 %v563, %v559
    %v732 = vpack.c.b16 %v564, %v560
    %v733 = vpack.c.b16 %v565, %v561
    %v734 = vpack.c.b16 %v570, %v566
    %v735 = vpack.c.b16 %v571, %v567
    %v736 = vpack.c.b16 %v572, %v568
    %v737 = vpack.c.b16 %v573, %v569
    %v738 = vpack.c.b16 %v578, %v574
    %v739 = vpack.c.b16 %v579, %v575
    %v740 = vpack.c.b16 %v580, %v576
    %v741 = vpack.c.b16 %v581, %v577
    %v742 = vpack.c.b16 %v586, %v582
    %v743 = vpack.c.b16 %v587, %v583
    %v744 = vpack.c.b16 %v588, %v584
    %v745 = vpack.c.b16 %v589, %v585
    %v746 = vpack.c.b16 %v594, %v590
    %v747 = vpack.c.b16 %v595, %v591
    %v748 = vpack.c.b16 %v596, %v592
    %v749 = vpack.c.b16 %v597, %v593
    %v750 = vpack.c.b16 %v602, %v598
    %v751 = vpack.c.b16 %v603, %v599
    %v752 = vpack.c.b16 %v604, %v600
    %v753 = vpack.c.b16 %v605, %v601
    %v754 = vpack.c.b16 %v610, %v606
    %v755 = vpack.c.b16 %v611, %v607
    %v756 = vpack.c.b16 %v612, %v608
    %v757 = vpack.c.b16 %v613, %v609
    %v758 = vpack.c.b16 %v618, %v614
    %v759 = vpack.c.b16 %v619, %v615
    %v760 = vpack.c.b16 %v620, %v616
    %v761 = vpack.c.b16 %v621, %v617
    %v762 = vpack.c.b16 %v626, %v622
    %v763 = vpack.c.b16 %v627, %v623
    %v764 = vpack.c.b16 %v628, %v624
    %v765 = vpack.c.b16 %v629, %v625
    %v766 = vpack.c.b16 %v634, %v630
    %v767 = vpack.c.b16 %v635, %v631
    %v768 = vpack.c.b16 %v636, %v632
    %v769 = vpack.c.b16 %v637, %v633
    %v770 = vpack.c.b16 %v642, %v638
    %v771 = vpack.c.b16 %v643, %v639
    %v772 = vpack.c.b16 %v644, %v640
    %v773 = vpack.c.b16 %v645, %v641
    %902 = vmatprep.subr.bf16.mxu0 %v647
    %903 = vmatpush1.bf16.msra.mxu0 %v646
    %904 = vmatprep.subr.bf16.mxu0 %v651
    %905 = vmatpush1.bf16.msra.mxu0 %v650
    %906 = vmatprep.subr.bf16.mxu0 %v655
    %907 = vmatpush1.bf16.msra.mxu0 %v654
    %908 = vmatprep.subr.bf16.mxu0 %v659
    %909 = vmatpush1.bf16.msra.mxu0 %v658
    %910 = vmatprep.subr.bf16.mxu0 %v663
    %911 = vmatpush1.bf16.msra.mxu0 %v662
    %912 = vmatprep.subr.bf16.mxu0 %v667
    %913 = vmatpush1.bf16.msra.mxu0 %v666
    %914 = vmatprep.subr.bf16.mxu0 %v671
    %915 = vmatpush1.bf16.msra.mxu0 %v670
    %916 = vmatprep.subr.bf16.mxu0 %v675
    %917 = vmatpush1.bf16.msra.mxu0 %v674
    %918 = vmatprep.subr.bf16.mxu0 %v679
    %919 = vmatpush1.bf16.msra.mxu0 %v678
    %920 = vmatprep.subr.bf16.mxu0 %v683
    %921 = vmatpush1.bf16.msra.mxu0 %v682
    %922 = vmatprep.subr.bf16.mxu0 %v687
    %923 = vmatpush1.bf16.msra.mxu0 %v686
    %924 = vmatprep.subr.bf16.mxu0 %v691
    %925 = vmatpush1.bf16.msra.mxu0 %v690
    %926 = vmatprep.subr.bf16.mxu0 %v695
    %927 = vmatpush1.bf16.msra.mxu0 %v694
    %928 = vmatprep.subr.bf16.mxu0 %v699
    %929 = vmatpush1.bf16.msra.mxu0 %v698
    %930 = vmatprep.subr.bf16.mxu0 %v703
    %931 = vmatpush1.bf16.msra.mxu0 %v702
    %932 = vmatprep.subr.bf16.mxu0 %v707
    %933 = vmatpush1.bf16.msra.mxu0 %v706
    %934 = vmatprep.mubr.bf16.mxu0 %v255
    %935 = vmatmul.mubr.bf16.gmra.mrb[0].mxu0 %v254
    %v936 = vpop.f32.mrb[0].mxu0
    %v937 = vadd.f32 %v225, %v936
    %v938 = vpop.f32.mrb[0].mxu0
    %v939 = vadd.f32 %v229, %v938
    %v940 = vpop.f32.mrb[0].mxu0
    %v941 = vadd.f32 %v225, %v940
    %v942 = vpop.f32.mrb[0].mxu0
    %v943 = vadd.f32 %v229, %v942
    %944 = vdwg.mxu0
    %945 = vmatprep.subr.bf16.mxu0 %v711
    %946 = vmatpush1.bf16.msra.mxu0 %v710
    %947 = vmatprep.subr.bf16.mxu0 %v715
    %948 = vmatpush1.bf16.msra.mxu0 %v714
    %949 = vmatprep.subr.bf16.mxu0 %v719
    %950 = vmatpush1.bf16.msra.mxu0 %v718
    %951 = vmatprep.subr.bf16.mxu0 %v723
    %952 = vmatpush1.bf16.msra.mxu0 %v722
    %953 = vmatprep.subr.bf16.mxu0 %v727
    %954 = vmatpush1.bf16.msra.mxu0 %v726
    %955 = vmatprep.subr.bf16.mxu0 %v731
    %956 = vmatpush1.bf16.msra.mxu0 %v730
    %957 = vmatprep.subr.bf16.mxu0 %v735
    %958 = vmatpush1.bf16.msra.mxu0 %v734
    %959 = vmatprep.subr.bf16.mxu0 %v739
    %960 = vmatpush1.bf16.msra.mxu0 %v738
    %961 = vmatprep.subr.bf16.mxu0 %v743
    %962 = vmatpush1.bf16.msra.mxu0 %v742
    %963 = vmatprep.subr.bf16.mxu0 %v747
    %964 = vmatpush1.bf16.msra.mxu0 %v746
    %965 = vmatprep.subr.bf16.mxu0 %v751
    %966 = vmatpush1.bf16.msra.mxu0 %v750
    %967 = vmatprep.subr.bf16.mxu0 %v755
    %968 = vmatpush1.bf16.msra.mxu0 %v754
    %969 = vmatprep.subr.bf16.mxu0 %v759
    %970 = vmatpush1.bf16.msra.mxu0 %v758
    %971 = vmatprep.subr.bf16.mxu0 %v763
    %972 = vmatpush1.bf16.msra.mxu0 %v762
    %973 = vmatprep.subr.bf16.mxu0 %v767
    %974 = vmatpush1.bf16.msra.mxu0 %v766
    %975 = vmatprep.subr.bf16.mxu0 %v771
    %976 = vmatpush1.bf16.msra.mxu0 %v770
    %977 = vmatprep.mubr.bf16.mxu0 %v257
    %978 = vmatmul.mubr.bf16.gmra.mrb[0].mxu0 %v256
    %v979 = vpop.f32.mrb[0].mxu0
    %v980 = vadd.f32 %v937, %v979
    %v981 = vpop.f32.mrb[0].mxu0
    %v982 = vadd.f32 %v939, %v981
    %v983 = vpop.f32.mrb[0].mxu0
    %v984 = vadd.f32 %v941, %v983
    %v985 = vpop.f32.mrb[0].mxu0
    %v986 = vadd.f32 %v943, %v985
    %987 = vdwg.mxu0
    %988 = vmatprep.subr.bf16.mxu0 %v649
    %989 = vmatpush1.bf16.msra.mxu0 %v648
    %990 = vmatprep.subr.bf16.mxu0 %v653
    %991 = vmatpush1.bf16.msra.mxu0 %v652
    %992 = vmatprep.subr.bf16.mxu0 %v657
    %993 = vmatpush1.bf16.msra.mxu0 %v656
    %994 = vmatprep.subr.bf16.mxu0 %v661
    %995 = vmatpush1.bf16.msra.mxu0 %v660
    %996 = vmatprep.subr.bf16.mxu0 %v665
    %997 = vmatpush1.bf16.msra.mxu0 %v664
    %998 = vmatprep.subr.bf16.mxu0 %v669
    %999 = vmatpush1.bf16.msra.mxu0 %v668
    %1000 = vmatprep.subr.bf16.mxu0 %v673
    %1001 = vmatpush1.bf16.msra.mxu0 %v672
    %1002 = vmatprep.subr.bf16.mxu0 %v677
    %1003 = vmatpush1.bf16.msra.mxu0 %v676
    %1004 = vmatprep.subr.bf16.mxu0 %v681
    %1005 = vmatpush1.bf16.msra.mxu0 %v680
    %1006 = vmatprep.subr.bf16.mxu0 %v685
    %1007 = vmatpush1.bf16.msra.mxu0 %v684
    %1008 = vmatprep.subr.bf16.mxu0 %v689
    %1009 = vmatpush1.bf16.msra.mxu0 %v688
    %1010 = vmatprep.subr.bf16.mxu0 %v693
    %1011 = vmatpush1.bf16.msra.mxu0 %v692
    %1012 = vmatprep.subr.bf16.mxu0 %v697
    %1013 = vmatpush1.bf16.msra.mxu0 %v696
    %1014 = vmatprep.subr.bf16.mxu0 %v701
    %1015 = vmatpush1.bf16.msra.mxu0 %v700
    %1016 = vmatprep.subr.bf16.mxu0 %v705
    %1017 = vmatpush1.bf16.msra.mxu0 %v704
    %1018 = vmatprep.subr.bf16.mxu0 %v709
    %1019 = vmatpush1.bf16.msra.mxu0 %v708
    %1020 = vmatprep.mubr.bf16.mxu0 %v255
    %1021 = vmatmul.mubr.bf16.gmra.mrb[0].mxu0 %v254
    %v1022 = vpop.f32.mrb[0].mxu0
    %v1023 = vadd.f32 %v233, %v1022
    %v1024 = vpop.f32.mrb[0].mxu0
    %v1025 = vadd.f32 %v237, %v1024
    %v1026 = vpop.f32.mrb[0].mxu0
    %v1027 = vadd.f32 %v233, %v1026
    %v1028 = vpop.f32.mrb[0].mxu0
    %v1029 = vadd.f32 %v237, %v1028
    %1030 = vdwg.mxu0
    %1031 = vmatprep.subr.bf16.mxu0 %v713
    %1032 = vmatpush1.bf16.msra.mxu0 %v712
    %1033 = vmatprep.subr.bf16.mxu0 %v717
    %1034 = vmatpush1.bf16.msra.mxu0 %v716
    %1035 = vmatprep.subr.bf16.mxu0 %v721
    %1036 = vmatpush1.bf16.msra.mxu0 %v720
    %1037 = vmatprep.subr.bf16.mxu0 %v725
    %1038 = vmatpush1.bf16.msra.mxu0 %v724
    %1039 = vmatprep.subr.bf16.mxu0 %v729
    %1040 = vmatpush1.bf16.msra.mxu0 %v728
    %1041 = vmatprep.subr.bf16.mxu0 %v733
    %1042 = vmatpush1.bf16.msra.mxu0 %v732
    %1043 = vmatprep.subr.bf16.mxu0 %v737
    %1044 = vmatpush1.bf16.msra.mxu0 %v736
    %1045 = vmatprep.subr.bf16.mxu0 %v741
    %1046 = vmatpush1.bf16.msra.mxu0 %v740
    %1047 = vmatprep.subr.bf16.mxu0 %v745
    %1048 = vmatpush1.bf16.msra.mxu0 %v744
    %1049 = vmatprep.subr.bf16.mxu0 %v749
    %1050 = vmatpush1.bf16.msra.mxu0 %v748
    %1051 = vmatprep.subr.bf16.mxu0 %v753
    %1052 = vmatpush1.bf16.msra.mxu0 %v752
    %1053 = vmatprep.subr.bf16.mxu0 %v757
    %1054 = vmatpush1.bf16.msra.mxu0 %v756
    %1055 = vmatprep.subr.bf16.mxu0 %v761
    %1056 = vmatpush1.bf16.msra.mxu0 %v760
    %1057 = vmatprep.subr.bf16.mxu0 %v765
    %1058 = vmatpush1.bf16.msra.mxu0 %v764
    %1059 = vmatprep.subr.bf16.mxu0 %v769
    %1060 = vmatpush1.bf16.msra.mxu0 %v768
    %1061 = vmatprep.subr.bf16.mxu0 %v773
    %1062 = vmatpush1.bf16.msra.mxu0 %v772
    %1063 = vmatprep.mubr.bf16.mxu0 %v257
    %1064 = vmatmul.mubr.bf16.gmra.mrb[0].mxu0 %v256
    %v1065 = vpop.f32.mrb[0].mxu0
    %v1066 = vadd.f32 %v1023, %v1065
    %v1067 = vpop.f32.mrb[0].mxu0
    %v1068 = vadd.f32 %v1025, %v1067
    %v1069 = vpop.f32.mrb[0].mxu0
    %v1070 = vadd.f32 %v1027, %v1069
    %v1071 = vpop.f32.mrb[0].mxu0
    %v1072 = vadd.f32 %v1029, %v1071
    %1073 = vdwg.mxu0
    %vm1074 = vcmp.gt.f32.partialorder %v980, 0.0
    %vm1075 = vcmp.gt.f32.partialorder %v982, 0.0
    %vm1076 = vcmp.gt.f32.partialorder %v1066, 0.0
    %vm1077 = vcmp.gt.f32.partialorder %v1068, 0.0
    %vm1078 = vcmp.gt.f32.partialorder %v984, 0.0
    %vm1079 = vcmp.gt.f32.partialorder %v986, 0.0
    %vm1080 = vcmp.gt.f32.partialorder %v1070, 0.0
    %vm1081 = vcmp.gt.f32.partialorder %v1072, 0.0
    %v1082 = vstv %s68
    %v1083 = vmul.f32 %v1082, %v980
    %v1084 = vmul.f32 %v1082, %v982
    %v1085 = vmul.f32 %v1082, %v1066
    %v1086 = vmul.f32 %v1082, %v1068
    %v1087 = vmul.f32 %v1082, %v984
    %v1088 = vmul.f32 %v1082, %v986
    %v1089 = vmul.f32 %v1082, %v1070
    %v1090 = vmul.f32 %v1082, %v1072
    %v1091 = vsel %vm1074, %v980, %v1083
    %v1092 = vsel %vm1075, %v982, %v1084
    %v1093 = vsel %vm1076, %v1066, %v1085
    %v1094 = vsel %vm1077, %v1068, %v1086
    %v1095 = vsel %vm1078, %v984, %v1087
    %v1096 = vsel %vm1079, %v986, %v1088
    %v1097 = vsel %vm1080, %v1070, %v1089
    %v1098 = vsel %vm1081, %v1072, %v1090
    %v1099 = vld [vmem:[%s4] sm:$0xf]
    %v1101 = vlaneseq
    %v1102 = vshrl.u32 %v1101, 7
    %v1103 = vsub.s32 0, %v1102
    %v1104 = vrot.slane %v1099, %v1103
    %v1105 = vlaneseq
    %v1106 = vshrl.u32 %v1105, 7
    %v1107 = vsub.s32 1, %v1106
    %v1108 = vrot.slane %v1099, %v1107
    %v1109 = vlaneseq
    %v1110 = vshrl.u32 %v1109, 7
    %v1111 = vsub.s32 2, %v1110
    %v1112 = vrot.slane %v1099, %v1111
    %v1113 = vlaneseq
    %v1114 = vshrl.u32 %v1113, 7
    %v1115 = vsub.s32 3, %v1114
    %v1116 = vrot.slane %v1099, %v1115
    %v1121 = vmul.f32 %v1091, %v1104
    %v1122 = vmul.f32 %v1092, %v1108
    %v1123 = vmul.f32 %v1093, %v1112
    %v1124 = vmul.f32 %v1094, %v1116
    %v1125 = vmul.f32 %v1095, %v1104
    %v1126 = vmul.f32 %v1096, %v1108
    %v1127 = vmul.f32 %v1097, %v1112
    %v1128 = vmul.f32 %v1098, %v1116
    %v1129 = vadd.f32 %v1121, %v1122
    %v1130 = vadd.f32 %v1129, %v1123
    %v1131 = vadd.f32 %v1130, %v1124
    %1132 = vadd.xlane.f32.xlu0 %v1131
    %v1133 = vpop.xlane.xlu0 %1132
    %v1134 = vadd.f32 %v1125, %v1126
    %v1135 = vadd.f32 %v1134, %v1127
    %v1136 = vadd.f32 %v1135, %v1128
    %1137 = vadd.xlane.f32.xlu0 %v1136
    %v1138 = vpop.xlane.xlu0 %1137
    %v1139 = vadd.f32 %v84, %v1133
    %v1140 = vadd.f32 %v87, %v1138
    %v1141 = vstv %s69
    %v1142 = vadd.f32 %v1139, %v1141
    %v1143 = vadd.f32 %v1140, %v1141
    %v1144 = vsub.f32 0.0, %v1142
    %v1145 = vsub.f32 0.0, %v1143
    %v1146 = vmul.f32 %v1144, 1.442695
    %v1147 = vpow.pop %v1146
    %v1148 = vmul.f32 %v1145, 1.442695
    %v1149 = vpow.pop %v1148
    %v1150 = vadd.f32 %v1147, 1.0
    %v1151 = vadd.f32 %v1149, 1.0
    %v1152 = vrcp.pop %v1150
    %v1153 = vmul.f32 1.0, %v1152
    %v1154 = vrcp.pop %v1151
    %v1155 = vmul.f32 1.0, %v1154
    %v1158 = vlaneseq
    %v1159 = vand.u32 %v1158, 127
    %v1160 = vlaneseq
    %v1161 = vshrl.u32 %v1160, 7
    %v1162 = vsub.s32 %v1159, %v1161
    %v1163 = vrot.slane %v1153, %v1162
    %v1164 = vadd.s32 %v1159, 4294967288
    %v1165 = vlaneseq
    %v1166 = vshrl.u32 %v1165, 7
    %v1167 = vsub.s32 %v1164, %v1166
    %v1168 = vrot.slane %v1155, %v1167
    %vm1169 = vcmask 130112
    %v1170 = vsel %vm1169, %v1168, %v1163
    %vm1172 = vcmask 122880
    %1173 = vst.msk [vmem:[#allocation9] sm:$0x1] %vm1172, %v1170
    // Predicated region
    $region42: #{tpu_custom_call.1} parent=1 // pred_check
      _
    $region43: #{tpu_custom_call.1} parent=1 // pred_check_branch
      %1175 = sbr.rel (0) target = $region45
    $region44: #{tpu_custom_call.1} parent=1 // pred_region
      %s1177 = ssub.s32 16, 16
      %1178 = vsyncadd [#allocation4], %s1177
      %s1180 = sshll.u32 [#allocation9], 4
      %s1181 = int_to_ptr.vmem [resolvable:$true] %s1180
      %1183 = dma.vmem_to_hbm [thread:$0]  %s1181, 16, %s7, [#allocation4]
    $region45: #{tpu_custom_call.1} parent=1 // pred_fallthru
      _
    // Predicated region
    $region46: #{tpu_custom_call.1} parent=1 // pred_check
      _
    $region47: #{tpu_custom_call.1} parent=1 // pred_check_branch
      %1185 = sbr.rel (0) target = $region49
    $region48: #{tpu_custom_call.1} parent=1 // pred_region
      %1186 = dma.done [#allocation4], 16
    $region49: #{tpu_custom_call.1} parent=1 // pred_fallthru
      _
    %1187 = vsyncpa [#allocation3], 1
    %1188 = vsyncpa [#allocation7], 1
    %1189 = vsyncpa [#allocation4], 1
    %1190 = vsyncpa [#allocation5], 1

</llo_original>
